<compile_context>
chip_gen: v7x
topology: tpu7x:2x2x1
jax: 0.10.0
libtpu: 0.0.40
codegen_flags: <defaults>
</compile_context>

<pallas_src>
import jax
import jax.numpy as jnp
from jax.experimental import pallas as pl
from jax.experimental.pallas import tpu as pltpu


def _rxa_kernel(x_ref, wp_ref, wq_ref, o_ref):
    # x: (TB, K_blk, 2C) f32 — lanes = interleaved (real, imag) channels, sublanes = taps.
    x = x_ref[...]
    # Per-lane MAC over the conv taps (sublane axis): pure VPU mul + cheap sublane reduce.
    #   wp lanes per channel: (wr, -wi)  -> adjacent-lane sum gives Re(y)
    #   wq lanes per channel: (wi,  wr)  -> adjacent-lane sum gives Im(y)
    o_ref[0] = jnp.sum(x * wp_ref[...], axis=1)
    o_ref[1] = jnp.sum(x * wq_ref[...], axis=1)


def _round_up(v, m):
    return ((v + m - 1) // m) * m


def _pick_batch_tile(B, K_blk, C2, target_bytes=4 << 20):
    """Batch rows per grid step: ~target_bytes of x per tile.

    Returned value is either B itself or a multiple of 8 (so the (2, B, 2C) output block
    satisfies the (8, 128) sublane tiling constraint), and never exceeds B.
    """
    per_row = K_blk * C2 * 4
    tb = max(1, target_bytes // per_row)
    if tb >= B:
        return B
    return min(max(8, (tb // 8) * 8), B)


def rxa_filter_complex(x, wr, wi, seq_size):
    """x: (B, n_seq, C, 1, 2) f32; wr, wi: (C, seq_size) f32 -> (B, C, 1, 2) f32."""
    B, n_seq, C, one, two = x.shape
    assert one == 1 and two == 2 and n_seq >= seq_size
    K = seq_size
    C2 = 2 * C

    # Native-layout view of the input (free reshape): lane 2c = real(c), lane 2c+1 = imag(c).
    xv = x.reshape(B, n_seq, C2)

    # Conv-tap block size: multiple of 8 (sublane tiling) unless that exceeds n_seq,
    # in which case the block spans the full sequence axis (also legal).
    K_blk = _round_up(K, 8)
    if K_blk > n_seq:
        K_blk = n_seq

    # Interleaved weight planes with the complex-combine signs folded in; zero-pad along K
    # so any extra taps in the block contribute nothing.
    wrT = wr.T.astype(jnp.float32)     # (K, C)
    wiT = wi.T.astype(jnp.float32)
    if K_blk != K:
        pad = ((0, K_blk - K), (0, 0))
        wrT = jnp.pad(wrT, pad)
        wiT = jnp.pad(wiT, pad)
    wp = jnp.stack([wrT, -wiT], axis=-1).reshape(K_blk, C2)   # [k,2c]=wr, [k,2c+1]=-wi
    wq = jnp.stack([wiT, wrT], axis=-1).reshape(K_blk, C2)    # [k,2c]=wi, [k,2c+1]= wr

    TB = _pick_batch_tile(B, K_blk, C2)
    grid = (pl.cdiv(B, TB),)

    out = pl.pallas_call(
        _rxa_kernel,
        out_shape=jax.ShapeDtypeStruct((2, B, C2), jnp.float32),
        grid=grid,
        in_specs=[
            # x window: tiled + double-buffered over batch; only the first K_blk taps are DMA'd.
            pl.BlockSpec((TB, K_blk, C2), lambda b: (b, 0, 0)),
            # Weight planes: constant block index -> stay resident in VMEM across the grid.
            pl.BlockSpec((K_blk, C2), lambda b: (0, 0)),
            pl.BlockSpec((K_blk, C2), lambda b: (0, 0)),
        ],
        out_specs=pl.BlockSpec((2, TB, C2), lambda b: (0, b, 0)),
        compiler_params=pltpu.CompilerParams(
            dimension_semantics=("parallel",)),   # lets v7x shard the batch over its 2 TCs
    )(xv, wp, wq)

    # Tiny epilogue on the K-times-smaller output: adjacent (real, imag) lanes just add.
    pq = out.reshape(2, B, C, 2).sum(axis=-1)         # plane 0 = Re(y), plane 1 = Im(y)
    return jnp.moveaxis(pq, 0, -1)[:, :, None, :]      # (B, C, 1, 2)


def _reference(x, wr, wi, seq_size):
    """Pure-JAX reference of the PyTorch forward (only conv output position t=0 survives)."""
    xc = x[..., 0] + 1j * x[..., 1]                  # (B, n_seq, C, 1) complex
    w = (wr + 1j * wi).astype(jnp.complex64)         # (C, K)
    xwin = xc[:, :seq_size, :, 0]                    # (B, K, C)
    y = jnp.einsum("bkc,ck->bc", xwin, w)            # (B, C)
    return jnp.stack([y.real, y.imag], axis=-1)[:, :, None, :].astype(jnp.float32)


if __name__ == "__main__":
    # Small shapes consistent with the module.
    n_batch = 2
    n_channels = 4
    seq_size = 8        # conv kernel size
    n_seq = 16          # input sequence length (>= seq_size)

    key = jax.random.PRNGKey(0)
    kx, kwr, kwi = jax.random.split(key, 3)

    x = jax.random.normal(kx, (n_batch, n_seq, n_channels, 1, 2), dtype=jnp.float32)
    # Synthetic complex Conv1d weights: one (1, 1, seq_size) complex filter per channel,
    # carried as separate real/imag float32 planes of shape (C, K).
    wr = jax.random.normal(kwr, (n_channels, seq_size), dtype=jnp.float32) * 0.1
    wi = jax.random.normal(kwi, (n_channels, seq_size), dtype=jnp.float32) * 0.1

    out = jax.block_until_ready(rxa_filter_complex(x, wr, wi, seq_size))
    ref = _reference(x, wr, wi, seq_size)

    assert out.shape == (n_batch, n_channels, 1, 2), out.shape
    assert jnp.allclose(out, ref, atol=1e-4, rtol=1e-4), (out, ref)

    print("KERNEL_OK")
</pallas_src>

<mosaic_0001>
module attributes {stable_mosaic.version = 11 : i64} {
  func.func @_rxa_kernel(%arg0: i32, %arg1: memref<2x8x8xf32, #tpu.memory_space<vmem>>, %arg2: memref<8x8xf32, #tpu.memory_space<vmem>>, %arg3: memref<8x8xf32, #tpu.memory_space<vmem>>, %arg4: memref<2x2x8xf32, #tpu.memory_space<vmem>>) attributes {dimension_semantics = [#tpu.dimension_semantics<parallel>], iteration_bounds = array<i64: 1>, scalar_prefetch = 0 : i64, scratch_operands = 0 : i64, tpu.core_type = #tpu.core_type<tc>, window_params = [{transform_indices = @transform_0, window_bounds = array<i64: 2, 8, 8>}, {pipeline_mode = #tpu.pipeline_mode<synchronous>, transform_indices = @transform_1, window_bounds = array<i64: 8, 8>}, {pipeline_mode = #tpu.pipeline_mode<synchronous>, transform_indices = @transform_2, window_bounds = array<i64: 8, 8>}, {transform_indices = @transform_3, window_bounds = array<i64: 2, 2, 8>}]} {
    %c0 = arith.constant 0 : index
    %c0_0 = arith.constant 0 : index
    %c0_1 = arith.constant 0 : index
    %0 = vector.load %arg1[%c0, %c0_0, %c0_1] : memref<2x8x8xf32, #tpu.memory_space<vmem>>, vector<2x8x8xf32>
    %c0_2 = arith.constant 0 : index
    %c0_3 = arith.constant 0 : index
    %1 = vector.load %arg2[%c0_2, %c0_3] : memref<8x8xf32, #tpu.memory_space<vmem>>, vector<8x8xf32>
    %2 = vector.shape_cast %1 : vector<8x8xf32> to vector<1x8x8xf32>
    %3 = vector.broadcast %2 : vector<1x8x8xf32> to vector<2x8x8xf32>
    %4 = arith.mulf %0, %3 : vector<2x8x8xf32>
    %cst = arith.constant dense<0.000000e+00> : vector<2x8xf32>
    %5 = vector.multi_reduction <add>, %4, %cst [1] : vector<2x8x8xf32> to vector<2x8xf32>
    %c0_4 = arith.constant 0 : index
    %c0_5 = arith.constant 0 : index
    %c0_6 = arith.constant 0 : index
    %6 = vector.load %arg4[%c0_4, %c0_5, %c0_6] : memref<2x2x8xf32, #tpu.memory_space<vmem>>, vector<1x2x8xf32>
    %7 = vector.shape_cast %6 : vector<1x2x8xf32> to vector<2x8xf32>
    %8 = vector.shape_cast %5 : vector<2x8xf32> to vector<1x2x8xf32>
    tpu.vector_store %arg4[%c0_4, %c0_5, %c0_6], %8 {strides = array<i32>} : memref<2x2x8xf32, #tpu.memory_space<vmem>>, vector<1x2x8xf32>,
    %c0_7 = arith.constant 0 : index
    %c0_8 = arith.constant 0 : index
    %9 = vector.load %arg3[%c0_7, %c0_8] : memref<8x8xf32, #tpu.memory_space<vmem>>, vector<8x8xf32>
    %10 = vector.shape_cast %9 : vector<8x8xf32> to vector<1x8x8xf32>
    %11 = vector.broadcast %10 : vector<1x8x8xf32> to vector<2x8x8xf32>
    %12 = arith.mulf %0, %11 : vector<2x8x8xf32>
    %cst_9 = arith.constant dense<0.000000e+00> : vector<2x8xf32>
    %13 = vector.multi_reduction <add>, %12, %cst_9 [1] : vector<2x8x8xf32> to vector<2x8xf32>
    %c1 = arith.constant 1 : index
    %c0_10 = arith.constant 0 : index
    %c0_11 = arith.constant 0 : index
    %14 = vector.load %arg4[%c1, %c0_10, %c0_11] : memref<2x2x8xf32, #tpu.memory_space<vmem>>, vector<1x2x8xf32>
    %15 = vector.shape_cast %14 : vector<1x2x8xf32> to vector<2x8xf32>
    %16 = vector.shape_cast %13 : vector<2x8xf32> to vector<1x2x8xf32>
    tpu.vector_store %arg4[%c1, %c0_10, %c0_11], %16 {strides = array<i32>} : memref<2x2x8xf32, #tpu.memory_space<vmem>>, vector<1x2x8xf32>,
    return
  }
  func.func @transform_0(%arg0: i32) -> (i32, i32, i32) {
    %c0_i32 = arith.constant 0 : i32
    %c0_i32_0 = arith.constant 0 : i32
    %c0_i32_1 = arith.constant 0 : i32
    return %arg0, %c0_i32, %c0_i32_0 : i32, i32, i32
  }
  func.func @transform_1(%arg0: i32) -> (i32, i32) {
    %c0_i32 = arith.constant 0 : i32
    %c0_i32_0 = arith.constant 0 : i32
    %c0_i32_1 = arith.constant 0 : i32
    return %c0_i32, %c0_i32_0 : i32, i32
  }
  func.func @transform_2(%arg0: i32) -> (i32, i32) {
    %c0_i32 = arith.constant 0 : i32
    %c0_i32_0 = arith.constant 0 : i32
    %c0_i32_1 = arith.constant 0 : i32
    return %c0_i32, %c0_i32_0 : i32, i32
  }
  func.func @transform_3(%arg0: i32) -> (i32, i32, i32) {
    %c0_i32 = arith.constant 0 : i32
    %c0_i32_0 = arith.constant 0 : i32
    %c0_i32_1 = arith.constant 0 : i32
    return %c0_i32, %arg0, %c0_i32_0 : i32, i32, i32
  }
}

</mosaic_0001>

<llo_original>
// kernel: tpu_custom_call.1
$region0: #{tpu_custom_call.1}
  #allocation0 [shape = 'u32[]', space=smem, size = 0x4, offset = 0x4, fixed_abs, tag = 'smem constant byte address 0x4 - core index']
  #allocation1 [shape = 'u32[144,128]{1,0:T(1,128)}', space=vmem, size = 0x12000, scoped, tag = 'internal scratch']
  %s0 = inlined_call_operand.vmem [shape: f32[2,16,8], index: 0, kind: input, shape index: {}]
  %s1 = inlined_call_operand.vmem [shape: f32[8,8], index: 1, kind: input, shape index: {}]
  %s2 = inlined_call_operand.vmem [shape: f32[8,8], index: 2, kind: input, shape index: {}]
  %s3 = inlined_call_operand.hbm [shape: f32[2,2,8], index: 3, kind: output, shape index: {}]
  %s4 = sld [smem:[#allocation0]]
  $region60: #{tpu_custom_call.1} parent=0
    _
  %s6 = ssub.s32 1, %s4
  %s7 = scalar_select 0, %s6, %s4
  $region1: #{tpu_custom_call.1} parent=0
    #allocation2 [shape = 'u8[8192]{0}', space=vmem, size = 0x2000, scoped, tag = 'input window, operand 0, single buffered']
    #allocation3 [shape = 'u8[2048]{0}', space=vmem, size = 0x800, scoped, tag = 'output window, operand 0, single buffered']
    #allocation4 [shape = 's32[1]{0}', space=sflag, size = 0x4, scoped, tag = 'scoped memory for tpu_custom_call.1']
    %8 = vsyncpa [#allocation4], 0
    // Predicated region
    $region2: #{tpu_custom_call.1} parent=1 // pred_check
      _
    $region3: #{tpu_custom_call.1} parent=1 // pred_check_branch
      %10 = sbr.rel (0) target = $region5
    $region4: #{tpu_custom_call.1} parent=1 // pred_region
      // Predicated region
      $region6: #{tpu_custom_call.1} parent=4 // pred_check
        _
      $region7: #{tpu_custom_call.1} parent=4 // pred_check_branch
        %12 = sbr.rel (0) target = $region9
      $region8: #{tpu_custom_call.1} parent=4 // pred_region
        // Predicated region
        $region10: #{tpu_custom_call.1} parent=8 // pred_check
          _
        $region11: #{tpu_custom_call.1} parent=8 // pred_check_branch
          %14 = sbr.rel (0) target = $region13
        $region12: #{tpu_custom_call.1} parent=8 // pred_region
          // Predicated region
          $region25: #{tpu_custom_call.1} parent=12 // pred_check
            _
          $region26: #{tpu_custom_call.1} parent=12 // pred_check_branch
            %31 = sbr.rel (0) target = $region28
          $region27: #{tpu_custom_call.1} parent=12 // pred_region
            loop: start=0, step=1, limit=1
            $region29: #{tpu_custom_call.1} parent=27 // loop_pre_header
              _
            $region30: #{tpu_custom_call.1} parent=27 // loop_header
              %s33 = sphi 0, %s37
              %p34 = scmp.ge.s32.totalorder %s33, 1
              %s38 = sphi %s0, %s0
              %s39 = sphi [#allocation2], [#allocation2]
            $region31: #{tpu_custom_call.1} parent=27 // loop_header_branch
              %36 = sbr.rel (%p34) target = $region35
            $region32: #{tpu_custom_call.1} parent=27 // loop_body
              %v40 = vld [vmem:[%s38] sm:$0xff]
              %41 = vst [vmem:[%s39] sm:$0xff] %v40
              %v42 = vld [vmem:[%s38 + $0x10] sm:$0xff]
              %43 = vst [vmem:[%s39 + $0x8] sm:$0xff] %v42
            $region33: #{tpu_custom_call.1} parent=27 // loop_footer
              %s37 = sadd.s32 1, %s33
            $region34: #{tpu_custom_call.1} parent=27 // loop_footer_branch
              %32 = sbr.rel target = $region30
            $region35: #{tpu_custom_call.1} parent=27 // loop_exit
              _
          $region28: #{tpu_custom_call.1} parent=12 // pred_fallthru
            _
          // Predicated region
          $region36: #{tpu_custom_call.1} parent=12 // pred_check
            _
          $region37: #{tpu_custom_call.1} parent=12 // pred_check_branch
            %45 = sbr.rel target = $region39
          $region38: #{tpu_custom_call.1} parent=12 // pred_region
            _
          $region39: #{tpu_custom_call.1} parent=12 // pred_fallthru
            _
        $region13: #{tpu_custom_call.1} parent=8 // pred_fallthru
          _
        // Predicated region
        $region14: #{tpu_custom_call.1} parent=8 // pred_check
          _
        $region15: #{tpu_custom_call.1} parent=8 // pred_check_branch
          %16 = sbr.rel target = $region17
        $region16: #{tpu_custom_call.1} parent=8 // pred_region
          loop: start=0, step=1, limit=1
          $region18: #{tpu_custom_call.1} parent=16 // loop_pre_header
            _
          $region19: #{tpu_custom_call.1} parent=16 // loop_header
            %s19 = sphi 0, %s23
            %p20 = scmp.ge.s32.totalorder %s19, 1
            %s24 = sphi %s0, %s0
            %s25 = sphi [#allocation2], [#allocation2]
          $region20: #{tpu_custom_call.1} parent=16 // loop_header_branch
            %22 = sbr.rel (%p20) target = $region24
          $region21: #{tpu_custom_call.1} parent=16 // loop_body
            %v26 = vld [vmem:[%s24] sm:$0xff]
            %27 = vst [vmem:[%s25] sm:$0xff] %v26
            %v28 = vld [vmem:[%s24 + $0x10] sm:$0xff]
            %29 = vst [vmem:[%s25 + $0x8] sm:$0xff] %v28
          $region22: #{tpu_custom_call.1} parent=16 // loop_footer
            %s23 = sadd.s32 1, %s19
          $region23: #{tpu_custom_call.1} parent=16 // loop_footer_branch
            %18 = sbr.rel target = $region19
          $region24: #{tpu_custom_call.1} parent=16 // loop_exit
            _
        $region17: #{tpu_custom_call.1} parent=8 // pred_fallthru
          _
      $region9: #{tpu_custom_call.1} parent=4 // pred_fallthru
        _
      %46 = vnop
    $region5: #{tpu_custom_call.1} parent=1 // pred_fallthru
      _
    // Predicated region
    $region40: #{tpu_custom_call.1} parent=1 // pred_check
      _
    $region41: #{tpu_custom_call.1} parent=1 // pred_check_branch
      %48 = sbr.rel (0) target = $region43
    $region42: #{tpu_custom_call.1} parent=1 // pred_region
      _
    $region43: #{tpu_custom_call.1} parent=1 // pred_fallthru
      _
    // Predicated region
    $region44: #{tpu_custom_call.1} parent=1 // pred_check
      _
    $region45: #{tpu_custom_call.1} parent=1 // pred_check_branch
      %50 = sbr.rel (0) target = $region47
    $region46: #{tpu_custom_call.1} parent=1 // pred_region
      _
    $region47: #{tpu_custom_call.1} parent=1 // pred_fallthru
      _
    // Predicated region
    $region48: #{tpu_custom_call.1} parent=1 // pred_check
      _
    $region49: #{tpu_custom_call.1} parent=1 // pred_check_branch
      %52 = sbr.rel (0) target = $region51
    $region50: #{tpu_custom_call.1} parent=1 // pred_region
      _
    $region51: #{tpu_custom_call.1} parent=1 // pred_fallthru
      _
    %v53 = vld [vmem:[#allocation2] sm:$0xff]
    %v54 = vld [vmem:[#allocation2 + $0x8] sm:$0xff]
    %v55 = vld [vmem:[%s1] sm:$0xff]
    %v56 = vmul.f32 %v53, %v55
    %v57 = vmul.f32 %v54, %v55
    %vm58 = vcmask 64512
    %v59 = vsel %vm58, %v56, 0.0
    %v60 = vrot.slane %v59, 4
    %v61 = vadd.f32 %v59, %v60
    %v62 = vrot.slane %v61, 2
    %v63 = vadd.f32 %v61, %v62
    %v64 = vrot.slane %v63, 1
    %v65 = vadd.f32 %v63, %v64
    %v66 = vsel %vm58, %v57, 0.0
    %v67 = vrot.slane %v66, 4
    %v68 = vadd.f32 %v66, %v67
    %v69 = vrot.slane %v68, 2
    %v70 = vadd.f32 %v68, %v69
    %v71 = vrot.slane %v70, 1
    %v72 = vadd.f32 %v70, %v71
    %vm75 = vcmask 1041409
    %v76 = vsel %vm75, %v72, %v65
    %vm78 = vcmask 58368
    %79 = vst.msk [vmem:[#allocation3] sm:$0x3] %vm78, %v76
    %v80 = vld [vmem:[%s2] sm:$0xff]
    %v81 = vmul.f32 %v53, %v80
    %v82 = vmul.f32 %v54, %v80
    %v83 = vsel %vm58, %v81, 0.0
    %v84 = vrot.slane %v83, 4
    %v85 = vadd.f32 %v83, %v84
    %v86 = vrot.slane %v85, 2
    %v87 = vadd.f32 %v85, %v86
    %v88 = vrot.slane %v87, 1
    %v89 = vadd.f32 %v87, %v88
    %v90 = vsel %vm58, %v82, 0.0
    %v91 = vrot.slane %v90, 4
    %v92 = vadd.f32 %v90, %v91
    %v93 = vrot.slane %v92, 2
    %v94 = vadd.f32 %v92, %v93
    %v95 = vrot.slane %v94, 1
    %v96 = vadd.f32 %v94, %v95
    %v99 = vsel %vm75, %v96, %v89
    %s101 = scalar_lea.vmem [#allocation3], 2
    %102 = vst.msk [vmem:[%s101] sm:$0x3] %vm78, %v99
    // Predicated region
    $region52: #{tpu_custom_call.1} parent=1 // pred_check
      _
    $region53: #{tpu_custom_call.1} parent=1 // pred_check_branch
      %104 = sbr.rel (0) target = $region55
    $region54: #{tpu_custom_call.1} parent=1 // pred_region
      %s106 = ssub.s32 64, 64
      %107 = vsyncadd [#allocation4], %s106
      %s108 = sshll.u32 [#allocation3], 4
      %s109 = int_to_ptr.vmem [resolvable:$true] %s108
      %114 = dma.vmem_to_hbm [thread:$0]  %s109, 64, %s3, [#allocation4], 32, 32, 2
    $region55: #{tpu_custom_call.1} parent=1 // pred_fallthru
      _
    // Predicated region
    $region56: #{tpu_custom_call.1} parent=1 // pred_check
      _
    $region57: #{tpu_custom_call.1} parent=1 // pred_check_branch
      %116 = sbr.rel (0) target = $region59
    $region58: #{tpu_custom_call.1} parent=1 // pred_region
      %117 = dma.done [#allocation4], 64
    $region59: #{tpu_custom_call.1} parent=1 // pred_fallthru
      _
    %118 = vsyncpa [#allocation4], 1

</llo_original>
